<compile_context>
chip_gen: v5e
topology: v5e:2x2
jax: 0.10.0
libtpu: 0.0.40
codegen_flags: <defaults>
</compile_context>

<pallas_src>
import numpy as np
import jax
import jax.numpy as jnp
from jax import lax
from jax.experimental import pallas as pl
from jax.experimental.pallas import tpu as pltpu

N_IN = 3         # rnnBrain.INPUT_SIZE
N_HID = 6        # rnnBrain.HIDDEN_SIZE
N_OUT = 3        # forward() returns the last 3 hidden units
LANES = 128


def make_params():
    # Deterministic parameters: the constant matrices from init_brainA1
    # (random perturbations dropped so the script is fully deterministic).
    W_ih = np.array(
        [[-0.0706, -0.1586, 0.1262],
         [-0.1394, -0.0662, -0.0818],
         [-0.0753, 0.0357, -0.1296],
         [0.2903, 1.1314, 0.1728],
         [0.6691, 0.052, 0.1075],
         [0.1995, 0.1139, 0.7112]], dtype=np.float32)
    W_hh_base = np.array(
        [[-0.0954, 0.1125, -0.1212, -0.0522, -0.0308, -0.1376],
         [-0.1538, -0.0662, -0.2202, -0.0414, 0.1605, -0.0763],
         [0.1592, 0.0115, -0.1116, -0.0135, -0.2496, 0.1311],
         [0.2584, -0.1853, -0.0563, 0.0859, 0.1063, -0.1611],
         [-0.2139, -0.063, 0.0538, -0.0242, -0.181, 0.1133],
         [-0.1655, 0.1978, 0.1442, 0.0524, 0.108, 0.0099]])
    W_hh = (W_hh_base + 0.01 * np.identity(N_HID)).astype(np.float32)
    b_ih = np.array([-0.1707, 0.2708, 0.1886, 0.1015, 0.0957, 0.0282],
                    dtype=np.float32)
    b_hh = np.array([0.2261, 0.1568, 0.2925, 0.3509, 0.1058, 0.1845],
                    dtype=np.float32)
    return W_ih, W_hh, b_ih, b_hh


# ---- Parameters folded to Python-scalar literals baked into the kernel. ----
# _WT[j][m]  = W_ih[3+m, j]   (W_ih^T restricted to the 3 returned hidden units)
# _BIAS[m]   = (b_ih + b_hh)[3+m]
_W_IH, _W_HH, _B_IH, _B_HH = make_params()
_WT = [[float(_W_IH[N_HID - N_OUT + m, j]) for m in range(N_OUT)]
       for j in range(N_IN)]
_BIAS = [float((_B_IH + _B_HH)[N_HID - N_OUT + m]) for m in range(N_OUT)]


def _lane_consts():
    """Build (1,128) f32 vectors holding the folded weights/bias in lanes 0..2.

    Built from a lane-iota plus a few selects over scalar literals -> no
    operand, no DMA, a handful of VPU ops.  Lanes 3..127 are exactly 0.
    """
    lane = lax.broadcasted_iota(jnp.int32, (1, LANES), 1)

    def lanes3(v0, v1, v2):
        return jnp.where(lane == 0, jnp.float32(v0),
               jnp.where(lane == 1, jnp.float32(v1),
               jnp.where(lane == 2, jnp.float32(v2), jnp.float32(0.0))))

    w0 = lanes3(*_WT[0])
    w1 = lanes3(*_WT[1])
    w2 = lanes3(*_WT[2])
    b = lanes3(*_BIAS)
    return w0, w1, w2, b


def rnn_cell_kernel(x_ref, out_ref):
    """One tanh RNN cell step, restricted to the 3 returned hidden units.

    x_ref   : SMEM (3,) f32     -- input vector, read as scalars
    out_ref : VMEM (1, 128) f32 -- lane m = hidden unit 3+m; lanes 3..127 = 0
    """
    w0, w1, w2, b = _lane_consts()
    pre = x_ref[0] * w0 + x_ref[1] * w1 + x_ref[2] * w2 + b
    out_ref[...] = jnp.tanh(pre)


def rnn_cell_batched_kernel(xs_ref, out_ref):
    """Same cell, B samples packed along the sublane axis (one kernel call).

    xs_ref  : VMEM (B, 3) f32
    out_ref : VMEM (B, 128) f32 -- row b, lane m = hidden unit 3+m of sample b
    """
    w0, w1, w2, b = _lane_consts()
    xs = xs_ref[...]
    x0 = xs[:, 0:1]          # (B, 1) -> lane-broadcast against (1, 128)
    x1 = xs[:, 1:2]
    x2 = xs[:, 2:3]
    pre = x0 * w0 + x1 * w1 + x2 * w2 + b
    out_ref[...] = jnp.tanh(pre)


def _forward_padded(x):
    """x: (3,) -> (1, 128) padded hidden row (lanes 0..2 real, rest 0)."""
    return pl.pallas_call(
        rnn_cell_kernel,
        out_shape=jax.ShapeDtypeStruct((1, LANES), jnp.float32),
        in_specs=[pl.BlockSpec(memory_space=pltpu.MemorySpace.SMEM)],
        out_specs=pl.BlockSpec(memory_space=pltpu.MemorySpace.VMEM),
        cost_estimate=pl.CostEstimate(
            flops=6 * LANES,
            transcendentals=LANES,
            bytes_accessed=(N_IN + LANES) * 4),
    )(x.astype(jnp.float32))


def _forward_batched_padded(xs):
    """xs: (B, 3) -> (B, 128) padded hidden rows."""
    B = xs.shape[0]
    return pl.pallas_call(
        rnn_cell_batched_kernel,
        out_shape=jax.ShapeDtypeStruct((B, LANES), jnp.float32),
        in_specs=[pl.BlockSpec(memory_space=pltpu.MemorySpace.VMEM)],
        out_specs=pl.BlockSpec(memory_space=pltpu.MemorySpace.VMEM),
        cost_estimate=pl.CostEstimate(
            flops=6 * LANES * B,
            transcendentals=LANES * B,
            bytes_accessed=(N_IN + LANES) * 4 * B),
    )(xs.astype(jnp.float32))


# Padded variants (keep lane-dense layout for downstream kernels).
rnn_brain_forward_padded = jax.jit(_forward_padded)
rnn_brain_forward_batched_padded = jax.jit(_forward_batched_padded)


@jax.jit
def rnn_brain_forward(x):
    """Exact module semantics: returns out[0, 0, -3:] as a (3,) vector."""
    return _forward_padded(x)[0, :N_OUT]


@jax.jit
def rnn_brain_forward_batched(xs):
    """(B, 3) -> (B, 3): one kernel call amortizes launch cost over B samples."""
    return _forward_batched_padded(xs)[:, :N_OUT]


if __name__ == "__main__":
    key = jax.random.PRNGKey(0)
    x = jax.random.normal(key, (N_IN,), dtype=jnp.float32)

    out = jax.block_until_ready(rnn_brain_forward(x))

    # Pure-JAX reference for the full module math (h0 = 0 => W_hh term is 0).
    W_ih = jnp.asarray(_W_IH)
    W_hh = jnp.asarray(_W_HH)
    b_ih = jnp.asarray(_B_IH)
    b_hh = jnp.asarray(_B_HH)
    h0 = jnp.zeros((N_HID,), jnp.float32)
    ref = jnp.tanh(x @ W_ih.T + h0 @ W_hh.T + b_ih + b_hh)[-N_OUT:]

    assert out.shape == (N_OUT,)
    assert jnp.allclose(out, ref, atol=1e-5), (out, ref)

    # Batched path: B independent calls to forward() folded into one launch.
    B = 8
    xs = jax.random.normal(jax.random.PRNGKey(1), (B, N_IN), dtype=jnp.float32)
    outs = jax.block_until_ready(rnn_brain_forward_batched(xs))
    ref_b = jnp.tanh(xs @ W_ih.T + b_ih + b_hh)[:, -N_OUT:]
    assert outs.shape == (B, N_OUT)
    assert jnp.allclose(outs, ref_b, atol=1e-5), (outs, ref_b)

    # Padded outputs: lanes 3..127 are exactly zero (lane-dense layout kept).
    pad = jax.block_until_ready(rnn_brain_forward_padded(x))
    assert jnp.allclose(pad[0, N_OUT:], 0.0)

    print("KERNEL_OK")
</pallas_src>

<mosaic_0001>
module attributes {stable_mosaic.version = 11 : i64} {
  func.func @rnn_cell_kernel(%arg0: memref<3xf32, #tpu.memory_space<smem>>, %arg1: memref<1x128xf32, #tpu.memory_space<vmem>>) attributes {dimension_semantics = [], scalar_prefetch = 0 : i64, scratch_operands = 0 : i64, tpu.core_type = #tpu.core_type<tc>} {
    %0 = tpu.iota {dimensions = array<i32: 1>} : vector<1x128xi32>
    %c0_i32 = arith.constant 0 : i32
    %1 = vector.broadcast %c0_i32 : i32 to vector<1x128xi32>
    %2 = arith.cmpi eq, %0, %1 : vector<1x128xi32>
    %c1_i32 = arith.constant 1 : i32
    %3 = vector.broadcast %c1_i32 : i32 to vector<1x128xi32>
    %4 = arith.cmpi eq, %0, %3 : vector<1x128xi32>
    %c2_i32 = arith.constant 2 : i32
    %5 = vector.broadcast %c2_i32 : i32 to vector<1x128xi32>
    %6 = arith.cmpi eq, %0, %5 : vector<1x128xi32>
    %cst = arith.constant 1.995000e-01 : f32
    %cst_0 = arith.constant 0.000000e+00 : f32
    %7 = vector.broadcast %cst : f32 to vector<1x128xf32>
    %8 = vector.broadcast %cst_0 : f32 to vector<1x128xf32>
    %9 = arith.select %6, %7, %8 : vector<1x128xi1>, vector<1x128xf32>
    %cst_1 = arith.constant 0.669099986 : f32
    %10 = vector.broadcast %cst_1 : f32 to vector<1x128xf32>
    %11 = arith.select %4, %10, %9 : vector<1x128xi1>, vector<1x128xf32>
    %cst_2 = arith.constant 2.903000e-01 : f32
    %12 = vector.broadcast %cst_2 : f32 to vector<1x128xf32>
    %13 = arith.select %2, %12, %11 : vector<1x128xi1>, vector<1x128xf32>
    %c0_i32_3 = arith.constant 0 : i32
    %14 = vector.broadcast %c0_i32_3 : i32 to vector<1x128xi32>
    %15 = arith.cmpi eq, %0, %14 : vector<1x128xi32>
    %c1_i32_4 = arith.constant 1 : i32
    %16 = vector.broadcast %c1_i32_4 : i32 to vector<1x128xi32>
    %17 = arith.cmpi eq, %0, %16 : vector<1x128xi32>
    %c2_i32_5 = arith.constant 2 : i32
    %18 = vector.broadcast %c2_i32_5 : i32 to vector<1x128xi32>
    %19 = arith.cmpi eq, %0, %18 : vector<1x128xi32>
    %cst_6 = arith.constant 1.139000e-01 : f32
    %cst_7 = arith.constant 0.000000e+00 : f32
    %20 = vector.broadcast %cst_6 : f32 to vector<1x128xf32>
    %21 = vector.broadcast %cst_7 : f32 to vector<1x128xf32>
    %22 = arith.select %19, %20, %21 : vector<1x128xi1>, vector<1x128xf32>
    %cst_8 = arith.constant 5.200000e-02 : f32
    %23 = vector.broadcast %cst_8 : f32 to vector<1x128xf32>
    %24 = arith.select %17, %23, %22 : vector<1x128xi1>, vector<1x128xf32>
    %cst_9 = arith.constant 1.131400e+00 : f32
    %25 = vector.broadcast %cst_9 : f32 to vector<1x128xf32>
    %26 = arith.select %15, %25, %24 : vector<1x128xi1>, vector<1x128xf32>
    %c0_i32_10 = arith.constant 0 : i32
    %27 = vector.broadcast %c0_i32_10 : i32 to vector<1x128xi32>
    %28 = arith.cmpi eq, %0, %27 : vector<1x128xi32>
    %c1_i32_11 = arith.constant 1 : i32
    %29 = vector.broadcast %c1_i32_11 : i32 to vector<1x128xi32>
    %30 = arith.cmpi eq, %0, %29 : vector<1x128xi32>
    %c2_i32_12 = arith.constant 2 : i32
    %31 = vector.broadcast %c2_i32_12 : i32 to vector<1x128xi32>
    %32 = arith.cmpi eq, %0, %31 : vector<1x128xi32>
    %cst_13 = arith.constant 7.112000e-01 : f32
    %cst_14 = arith.constant 0.000000e+00 : f32
    %33 = vector.broadcast %cst_13 : f32 to vector<1x128xf32>
    %34 = vector.broadcast %cst_14 : f32 to vector<1x128xf32>
    %35 = arith.select %32, %33, %34 : vector<1x128xi1>, vector<1x128xf32>
    %cst_15 = arith.constant 1.075000e-01 : f32
    %36 = vector.broadcast %cst_15 : f32 to vector<1x128xf32>
    %37 = arith.select %30, %36, %35 : vector<1x128xi1>, vector<1x128xf32>
    %cst_16 = arith.constant 1.728000e-01 : f32
    %38 = vector.broadcast %cst_16 : f32 to vector<1x128xf32>
    %39 = arith.select %28, %38, %37 : vector<1x128xi1>, vector<1x128xf32>
    %c0_i32_17 = arith.constant 0 : i32
    %40 = vector.broadcast %c0_i32_17 : i32 to vector<1x128xi32>
    %41 = arith.cmpi eq, %0, %40 : vector<1x128xi32>
    %c1_i32_18 = arith.constant 1 : i32
    %42 = vector.broadcast %c1_i32_18 : i32 to vector<1x128xi32>
    %43 = arith.cmpi eq, %0, %42 : vector<1x128xi32>
    %c2_i32_19 = arith.constant 2 : i32
    %44 = vector.broadcast %c2_i32_19 : i32 to vector<1x128xi32>
    %45 = arith.cmpi eq, %0, %44 : vector<1x128xi32>
    %cst_20 = arith.constant 2.127000e-01 : f32
    %cst_21 = arith.constant 0.000000e+00 : f32
    %46 = vector.broadcast %cst_20 : f32 to vector<1x128xf32>
    %47 = vector.broadcast %cst_21 : f32 to vector<1x128xf32>
    %48 = arith.select %45, %46, %47 : vector<1x128xi1>, vector<1x128xf32>
    %cst_22 = arith.constant 2.015000e-01 : f32
    %49 = vector.broadcast %cst_22 : f32 to vector<1x128xf32>
    %50 = arith.select %43, %49, %48 : vector<1x128xi1>, vector<1x128xf32>
    %cst_23 = arith.constant 4.524000e-01 : f32
    %51 = vector.broadcast %cst_23 : f32 to vector<1x128xf32>
    %52 = arith.select %41, %51, %50 : vector<1x128xi1>, vector<1x128xf32>
    %c0 = arith.constant 0 : index
    %53 = memref.load %arg0[%c0] : memref<3xf32, #tpu.memory_space<smem>>
    %54 = vector.broadcast %53 : f32 to vector<1x128xf32>
    %55 = arith.mulf %54, %13 : vector<1x128xf32>
    %c1 = arith.constant 1 : index
    %56 = memref.load %arg0[%c1] : memref<3xf32, #tpu.memory_space<smem>>
    %57 = vector.broadcast %56 : f32 to vector<1x128xf32>
    %58 = arith.mulf %57, %26 : vector<1x128xf32>
    %59 = arith.addf %55, %58 : vector<1x128xf32>
    %c2 = arith.constant 2 : index
    %60 = memref.load %arg0[%c2] : memref<3xf32, #tpu.memory_space<smem>>
    %61 = vector.broadcast %60 : f32 to vector<1x128xf32>
    %62 = arith.mulf %61, %39 : vector<1x128xf32>
    %63 = arith.addf %59, %62 : vector<1x128xf32>
    %64 = arith.addf %63, %52 : vector<1x128xf32>
    %65 = math.tanh %64 : vector<1x128xf32>
    %c0_24 = arith.constant 0 : index
    %c0_25 = arith.constant 0 : index
    %66 = vector.load %arg1[%c0_24, %c0_25] : memref<1x128xf32, #tpu.memory_space<vmem>>, vector<1x128xf32>
    tpu.vector_store %arg1[%c0_24, %c0_25], %65 {strides = array<i32>} : memref<1x128xf32, #tpu.memory_space<vmem>>, vector<1x128xf32>,
    return
  }
}

</mosaic_0001>

<llo_original>
// kernel: rnn_brain_forward.1
$region0: #{rnn_brain_forward.1}
  #allocation0 [shape = 'u32[]', space=smem, size = 0x4, offset = 0x4, fixed_abs, tag = 'smem constant byte address 0x4 - core index']
  #allocation1 [shape = 'u32[72,128]{1,0:T(1,128)}', space=vmem, size = 0x9000, scoped, tag = 'internal scratch']
  %s0 = inlined_call_operand.hbm [shape: f32[3], index: 0, kind: input, shape index: {}]
  %s1 = inlined_call_operand.vmem [shape: f32[1,128], index: 1, kind: output, shape index: {}]
  %s2 = sld [smem:[#allocation0]]
  $region18: #{rnn_brain_forward.1} parent=0
    _
  %s4 = ssub.s32 1, %s2
  %s5 = scalar_select 0, %s4, %s2
  $region1: #{rnn_brain_forward.1} parent=0
    #allocation2 [shape = 'u8[512]{0}', space=smem, size = 0x200, scoped, tag = 'input window, operand 0, single buffered']
    #allocation3 [shape = 's32[1]{0}', space=sflag, size = 0x4, scoped, tag = 'scoped memory for rnn_brain_forward.1']
    %6 = vsyncpa [#allocation3], 0
    // Predicated region
    $region2: #{rnn_brain_forward.1} parent=1 // pred_check
      _
    $region3: #{rnn_brain_forward.1} parent=1 // pred_check_branch
      %8 = sbr.rel (0) target = $region5
    $region4: #{rnn_brain_forward.1} parent=1 // pred_region
      %10 = vsyncadd [#allocation3], 0
      %s12 = sshll.u32 %s0, 4
      %s13 = int_to_ptr.hbm [resolvable:$true] %s12
      %15 = dma.hbm_to_smem %s13, 16, [#allocation2], [#allocation3]
    $region5: #{rnn_brain_forward.1} parent=1 // pred_fallthru
      _
    // Predicated region
    $region6: #{rnn_brain_forward.1} parent=1 // pred_check
      _
    $region7: #{rnn_brain_forward.1} parent=1 // pred_check_branch
      %17 = sbr.rel (0) target = $region9
    $region8: #{rnn_brain_forward.1} parent=1 // pred_region
      %19 = dma.done [#allocation3], 16
    $region9: #{rnn_brain_forward.1} parent=1 // pred_fallthru
      _
    %20 = sfence
    %v21 = vlaneseq
    %v22 = vand.u32 %v21, 127
    %vm23 = vcmp.eq.s32.totalorder %v22, 0
    %vm24 = vcmp.eq.s32.totalorder %v22, 1
    %vm25 = vcmp.eq.s32.totalorder %v22, 2
    %v26 = vsel %vm25, 0.1995, 0.0
    %v27 = vsel %vm24, 0.6691, %v26
    %v28 = vsel %vm23, 0.2903, %v27
    %v29 = vsel %vm25, 0.1139, 0.0
    %v30 = vsel %vm24, 0.052, %v29
    %v31 = vsel %vm23, 1.1314, %v30
    %v32 = vsel %vm25, 0.7112, 0.0
    %v33 = vsel %vm24, 0.1075, %v32
    %v34 = vsel %vm23, 0.1728, %v33
    %v35 = vsel %vm25, 0.2127, 0.0
    %v36 = vsel %vm24, 0.2015, %v35
    %v37 = vsel %vm23, 0.4524, %v36
    %s38 = sld [smem:[#allocation2]]
    %v39 = vstv %s38
    %v40 = vmul.f32 %v39, %v28
    %s41 = sld [smem:[#allocation2 + $0x1]]
    %v42 = vstv %s41
    %v43 = vmul.f32 %v42, %v31
    %v44 = vadd.f32 %v40, %v43
    %s45 = sld [smem:[#allocation2 + $0x2]]
    %v46 = vstv %s45
    %v47 = vmul.f32 %v46, %v34
    %v48 = vadd.f32 %v44, %v47
    %v49 = vadd.f32 %v48, %v37
    %v50 = vtanh.pop %v49
    %51 = vst [vmem:[%s1] sm:$0x1] %v50
    // Predicated region
    $region10: #{rnn_brain_forward.1} parent=1 // pred_check
      _
    $region11: #{rnn_brain_forward.1} parent=1 // pred_check_branch
      %53 = sbr.rel (0) target = $region13
    $region12: #{rnn_brain_forward.1} parent=1 // pred_region
      _
    $region13: #{rnn_brain_forward.1} parent=1 // pred_fallthru
      _
    // Predicated region
    $region14: #{rnn_brain_forward.1} parent=1 // pred_check
      _
    $region15: #{rnn_brain_forward.1} parent=1 // pred_check_branch
      %55 = sbr.rel (0) target = $region17
    $region16: #{rnn_brain_forward.1} parent=1 // pred_region
      _
    $region17: #{rnn_brain_forward.1} parent=1 // pred_fallthru
      _
    %56 = vsyncpa [#allocation3], 1

</llo_original>
